<compile_context>
chip_gen: v7x
topology: tpu7x:2x2x1
jax: 0.10.0
libtpu: 0.0.40
codegen_flags: <defaults>
</compile_context>

<pallas_src>
import functools

import jax
import jax.numpy as jnp
from jax.experimental import pallas as pl
from jax.experimental.pallas import tpu as pltpu


_HEAD_PAD = 128  # fused decoder-head output width, padded to one full lane tile


# ----------------------------- Pallas kernel -------------------------------


def _superformula_diffusion_kernel(
    scal_ref,    # SMEM (2,)  f32: [sqrt(alpha_cumprod_t), sqrt(1 - alpha_cumprod_t)]
    x_ref,       # VMEM (TM, input_dim)      bf16
    noise_ref,   # VMEM (TM, 128)            f32  (lanes >= num_noised are zero)
    w1_ref,      # VMEM (input_dim, 128)     bf16
    b1_ref,      # VMEM (1, 128)             f32
    w2_ref,      # VMEM (128, latent_dim)    bf16
    b2_ref,      # VMEM (1, latent_dim)      f32
    wh_ref,      # VMEM (latent_dim, 128)    bf16  (cp | weights | knots, zero-padded)
    bh_ref,      # VMEM (1, 128)             f32
    out_ref,     # VMEM (TM, 128)            f32  noised heads (lane-dense slab)
    *,
    num_noised,  # static: lanes [0, num_noised) receive diffusion noise
):
    sqrt_a = scal_ref[0]
    sqrt_1ma = scal_ref[1]

    # Encoder: Linear -> ReLU -> Linear (bf16 MXU operands, f32 accumulation).
    h = jnp.dot(x_ref[...], w1_ref[...], preferred_element_type=jnp.float32)
    h = jnp.maximum(h + b1_ref[...], 0.0)
    latent = jnp.dot(h.astype(jnp.bfloat16), w2_ref[...],
                     preferred_element_type=jnp.float32) + b2_ref[...]

    # Fused decoder heads: one (latent_dim, 128) matmul, one full-width store.
    heads = jnp.dot(latent.astype(jnp.bfloat16), wh_ref[...],
                    preferred_element_type=jnp.float32) + bh_ref[...]

    # Lanes [0, num_noised): control points + weights -> scaled and noised.
    # Lanes [num_noised, ...): knots (and zero padding) -> passed through.
    lane = jax.lax.broadcasted_iota(jnp.int32, heads.shape, 1)
    noised = lane < num_noised
    scale = jnp.where(noised, sqrt_a, 1.0)
    nscale = jnp.where(noised, sqrt_1ma, 0.0)

    out_ref[...] = heads * scale + noise_ref[...] * nscale


# ------------------------------ JAX wrapper ---------------------------------


@functools.partial(jax.jit, static_argnames=("num_control_points", "block_m"))
def superformula_diffusion_forward(
    x, sqrt_scalars, noise, params, *, num_control_points=10, block_m=128
):
    """Fused forward pass.

    x:            (B, input_dim)  float32
    sqrt_scalars: (2,)            float32 -> [sqrt(a_t), sqrt(1 - a_t)]
    noise:        (B, 3*ncp)      float32 -> Gaussian noise for cp + weights
    params:       dict of weights/biases (see init_params)

    Returns (noisy_cp (B, ncp, 2), noisy_w (B, ncp), knots (B, ncp+1)).
    """
    batch, input_dim = x.shape
    ncp = num_control_points
    head_dim = 3 * ncp + 1                # 2*ncp cp + ncp weights + (ncp+1) knots
    num_noised = 3 * ncp
    hidden = params["w1"].shape[1]        # 128
    latent_dim = params["w2"].shape[1]    # 32

    # Pad batch so every grid step is a full (block_m, 128) unmasked store.
    n_tiles = pl.cdiv(batch, block_m)
    padded_batch = n_tiles * block_m
    pad_rows = padded_batch - batch
    if pad_rows:
        x = jnp.pad(x, ((0, pad_rows), (0, 0)))

    # bf16 MXU operands (accumulation stays f32 inside the kernel).
    x_bf = x.astype(jnp.bfloat16)
    w1 = params["w1"].astype(jnp.bfloat16)
    w2 = params["w2"].astype(jnp.bfloat16)

    # Lane-dense noise slab: only lanes [0, num_noised) carry noise.
    noise_slab = jnp.pad(
        noise, ((0, pad_rows), (0, _HEAD_PAD - num_noised))
    ).astype(jnp.float32)

    # Fuse the three decoder heads into one lane-dense (latent_dim, 128) weight.
    wh = jnp.concatenate([params["wcp"], params["ww"], params["wk"]], axis=1)
    bh = jnp.concatenate([params["bcp"], params["bw"], params["bk"]], axis=1)
    wh = jnp.pad(wh, ((0, 0), (0, _HEAD_PAD - head_dim))).astype(jnp.bfloat16)
    bh = jnp.pad(bh, ((0, 0), (0, _HEAD_PAD - head_dim)))

    kernel = functools.partial(
        _superformula_diffusion_kernel, num_noised=num_noised
    )

    def smem_spec(shape):
        return pl.BlockSpec(shape, lambda i: (0,) * len(shape),
                            memory_space=pltpu.MemorySpace.SMEM)

    def resident(shape):  # weights: same block every step -> stays in VMEM
        return pl.BlockSpec(shape, lambda i: (0,) * len(shape))

    out_slab = pl.pallas_call(
        kernel,
        out_shape=jax.ShapeDtypeStruct((padded_batch, _HEAD_PAD), jnp.float32),
        grid=(n_tiles,),
        in_specs=[
            smem_spec((2,)),                                       # sqrt scalars
            pl.BlockSpec((block_m, input_dim), lambda i: (i, 0)),  # x tile
            pl.BlockSpec((block_m, _HEAD_PAD), lambda i: (i, 0)),  # noise tile
            resident((input_dim, hidden)),                         # w1
            resident((1, hidden)),                                 # b1
            resident((hidden, latent_dim)),                        # w2
            resident((1, latent_dim)),                             # b2
            resident((latent_dim, _HEAD_PAD)),                     # fused head W
            resident((1, _HEAD_PAD)),                              # fused head b
        ],
        out_specs=pl.BlockSpec((block_m, _HEAD_PAD), lambda i: (i, 0)),
        compiler_params=pltpu.CompilerParams(
            dimension_semantics=("parallel",),
        ),
    )(sqrt_scalars, x_bf, noise_slab, w1, params["b1"], w2, params["b2"], wh, bh)

    out = out_slab[:batch]
    noisy_cp = out[:, : 2 * ncp].reshape(batch, ncp, 2)   # torch .view(-1, 10, 2)
    noisy_w = out[:, 2 * ncp: 3 * ncp]
    knots = out[:, 3 * ncp: 3 * ncp + ncp + 1]
    return noisy_cp, noisy_w, knots


# --------------------------- parameter / scheduler ---------------------------


def init_params(key, input_dim=200, latent_dim=32, num_control_points=10):
    """Deterministic synthetic parameters (shapes match the PyTorch module)."""
    ks = jax.random.split(key, 10)
    ncp = num_control_points

    def lin(kw, kb, fan_in, fan_out):
        bound = 1.0 / jnp.sqrt(fan_in)
        w = jax.random.uniform(kw, (fan_in, fan_out), jnp.float32, -bound, bound)
        b = jax.random.uniform(kb, (1, fan_out), jnp.float32, -bound, bound)
        return w, b

    w1, b1 = lin(ks[0], ks[1], input_dim, 128)
    w2, b2 = lin(ks[2], ks[3], 128, latent_dim)
    wcp, bcp = lin(ks[4], ks[5], latent_dim, ncp * 2)
    ww, bw = lin(ks[6], ks[7], latent_dim, ncp)
    wk, bk = lin(ks[8], ks[9], latent_dim, ncp + 1)

    return {
        "w1": w1, "b1": b1,
        "w2": w2, "b2": b2,
        "wcp": wcp, "bcp": bcp,
        "ww": ww, "bw": bw,
        "wk": wk, "bk": bk,
    }


def alpha_cumprod_schedule(timesteps=100):
    betas = jnp.linspace(0.0001, 0.02, timesteps, dtype=jnp.float32)
    alphas = 1.0 - betas
    return jnp.cumprod(alphas)


# ---------------------------------- main -------------------------------------


if __name__ == "__main__":
    batch = 4
    input_dim = 200
    latent_dim = 32
    num_control_points = 10
    timesteps = 100
    t = 17  # example timestep index

    root_key = jax.random.PRNGKey(0)
    k_param, k_x, k_noise = jax.random.split(root_key, 3)

    params = init_params(
        k_param,
        input_dim=input_dim,
        latent_dim=latent_dim,
        num_control_points=num_control_points,
    )
    x = jax.random.normal(k_x, (batch, input_dim), dtype=jnp.float32)

    # Diffusion scheduler scalars
    a_cum = alpha_cumprod_schedule(timesteps)
    a_t = a_cum[t]
    sqrt_scalars = jnp.array(
        [jnp.sqrt(a_t), jnp.sqrt(1.0 - a_t)], dtype=jnp.float32
    )

    # torch.randn_like noise for control points (2*ncp) and weights (ncp).
    noise = jax.random.normal(
        k_noise, (batch, 3 * num_control_points), dtype=jnp.float32
    )

    outs = superformula_diffusion_forward(
        x, sqrt_scalars, noise, params,
        num_control_points=num_control_points,
    )
    noisy_cp, noisy_w, knots = jax.block_until_ready(outs)

    assert noisy_cp.shape == (batch, num_control_points, 2)
    assert noisy_w.shape == (batch, num_control_points)
    assert knots.shape == (batch, num_control_points + 1)

    # f32 reference (same math as the PyTorch module).
    h_ref = jnp.maximum(x @ params["w1"] + params["b1"], 0.0)
    lat_ref = h_ref @ params["w2"] + params["b2"]
    cp_ref = lat_ref @ params["wcp"] + params["bcp"]
    w_ref = lat_ref @ params["ww"] + params["bw"]
    k_ref = lat_ref @ params["wk"] + params["bk"]

    sa, s1ma = sqrt_scalars[0], sqrt_scalars[1]
    exp_cp = cp_ref * sa + noise[:, : 2 * num_control_points] * s1ma
    exp_w = w_ref * sa + noise[:, 2 * num_control_points:] * s1ma

    tol = dict(atol=3e-2, rtol=3e-2)  # bf16 MXU operands vs f32 reference
    assert jnp.allclose(noisy_cp.reshape(batch, -1), exp_cp, **tol)
    assert jnp.allclose(noisy_w, exp_w, **tol)
    assert jnp.allclose(knots, k_ref, **tol)

    print("KERNEL_OK")
</pallas_src>

<mosaic_0001>
module attributes {stable_mosaic.version = 11 : i64} {
  func.func @_superformula_diffusion_kernel(%arg0: i32, %arg1: memref<2xf32, #tpu.memory_space<smem>>, %arg2: memref<128x200xbf16, #tpu.memory_space<vmem>>, %arg3: memref<128x128xf32, #tpu.memory_space<vmem>>, %arg4: memref<200x128xbf16, #tpu.memory_space<vmem>>, %arg5: memref<1x128xf32, #tpu.memory_space<vmem>>, %arg6: memref<128x32xbf16, #tpu.memory_space<vmem>>, %arg7: memref<1x32xf32, #tpu.memory_space<vmem>>, %arg8: memref<32x128xbf16, #tpu.memory_space<vmem>>, %arg9: memref<1x128xf32, #tpu.memory_space<vmem>>, %arg10: memref<128x128xf32, #tpu.memory_space<vmem>>) attributes {dimension_semantics = [#tpu.dimension_semantics<parallel>], iteration_bounds = array<i64: 1>, scalar_prefetch = 0 : i64, scratch_operands = 0 : i64, tpu.core_type = #tpu.core_type<tc>, window_params = [{transform_indices = @transform_0, window_bounds = array<i64: 2>}, {transform_indices = @transform_1, window_bounds = array<i64: 128, 200>}, {transform_indices = @transform_2, window_bounds = array<i64: 128, 128>}, {pipeline_mode = #tpu.pipeline_mode<synchronous>, transform_indices = @transform_3, window_bounds = array<i64: 200, 128>}, {pipeline_mode = #tpu.pipeline_mode<synchronous>, transform_indices = @transform_4, window_bounds = array<i64: 1, 128>}, {pipeline_mode = #tpu.pipeline_mode<synchronous>, transform_indices = @transform_5, window_bounds = array<i64: 128, 32>}, {pipeline_mode = #tpu.pipeline_mode<synchronous>, transform_indices = @transform_6, window_bounds = array<i64: 1, 32>}, {transform_indices = @transform_7, window_bounds = array<i64: 32, 128>}, {transform_indices = @transform_8, window_bounds = array<i64: 1, 128>}, {transform_indices = @transform_9, window_bounds = array<i64: 128, 128>}]} {
    %c0 = arith.constant 0 : index
    %0 = memref.load %arg1[%c0] : memref<2xf32, #tpu.memory_space<smem>>
    %c1 = arith.constant 1 : index
    %1 = memref.load %arg1[%c1] : memref<2xf32, #tpu.memory_space<smem>>
    %c0_0 = arith.constant 0 : index
    %c0_1 = arith.constant 0 : index
    %2 = vector.load %arg2[%c0_0, %c0_1] : memref<128x200xbf16, #tpu.memory_space<vmem>>, vector<128x200xbf16>
    %c0_2 = arith.constant 0 : index
    %c0_3 = arith.constant 0 : index
    %3 = vector.load %arg4[%c0_2, %c0_3] : memref<200x128xbf16, #tpu.memory_space<vmem>>, vector<200x128xbf16>
    %cst = arith.constant dense<0.000000e+00> : vector<128x128xf32>
    %4 = tpu.matmul %2, %3, %cst {dimension_numbers = #tpu.dot_dimension_numbers<[1], [0], [0], [1], [0, 0, 1, 1], [], []>} : vector<128x200xbf16>, vector<200x128xbf16>, vector<128x128xf32> -> vector<128x128xf32>
    %c0_4 = arith.constant 0 : index
    %c0_5 = arith.constant 0 : index
    %5 = vector.load %arg5[%c0_4, %c0_5] : memref<1x128xf32, #tpu.memory_space<vmem>>, vector<1x128xf32>
    %6 = vector.broadcast %5 : vector<1x128xf32> to vector<128x128xf32>
    %7 = arith.addf %4, %6 : vector<128x128xf32>
    %cst_6 = arith.constant 0.000000e+00 : f32
    %8 = vector.broadcast %cst_6 : f32 to vector<128x128xf32>
    %9 = arith.maximumf %7, %8 : vector<128x128xf32>
    %10 = arith.truncf %9 : vector<128x128xf32> to vector<128x128xbf16>
    %c0_7 = arith.constant 0 : index
    %c0_8 = arith.constant 0 : index
    %11 = vector.load %arg6[%c0_7, %c0_8] : memref<128x32xbf16, #tpu.memory_space<vmem>>, vector<128x32xbf16>
    %cst_9 = arith.constant dense<0.000000e+00> : vector<128x32xf32>
    %12 = tpu.matmul %10, %11, %cst_9 {dimension_numbers = #tpu.dot_dimension_numbers<[1], [0], [0], [1], [0, 0, 1, 1], [], []>} : vector<128x128xbf16>, vector<128x32xbf16>, vector<128x32xf32> -> vector<128x32xf32>
    %c0_10 = arith.constant 0 : index
    %c0_11 = arith.constant 0 : index
    %13 = vector.load %arg7[%c0_10, %c0_11] : memref<1x32xf32, #tpu.memory_space<vmem>>, vector<1x32xf32>
    %14 = vector.broadcast %13 : vector<1x32xf32> to vector<128x32xf32>
    %15 = arith.addf %12, %14 : vector<128x32xf32>
    %16 = arith.truncf %15 : vector<128x32xf32> to vector<128x32xbf16>
    %c0_12 = arith.constant 0 : index
    %c0_13 = arith.constant 0 : index
    %17 = vector.load %arg8[%c0_12, %c0_13] : memref<32x128xbf16, #tpu.memory_space<vmem>>, vector<32x128xbf16>
    %cst_14 = arith.constant dense<0.000000e+00> : vector<128x128xf32>
    %18 = tpu.matmul %16, %17, %cst_14 {dimension_numbers = #tpu.dot_dimension_numbers<[1], [0], [0], [1], [0, 0, 1, 1], [], []>} : vector<128x32xbf16>, vector<32x128xbf16>, vector<128x128xf32> -> vector<128x128xf32>
    %c0_15 = arith.constant 0 : index
    %c0_16 = arith.constant 0 : index
    %19 = vector.load %arg9[%c0_15, %c0_16] : memref<1x128xf32, #tpu.memory_space<vmem>>, vector<1x128xf32>
    %20 = vector.broadcast %19 : vector<1x128xf32> to vector<128x128xf32>
    %21 = arith.addf %18, %20 : vector<128x128xf32>
    %22 = tpu.iota {dimensions = array<i32: 1>} : vector<128x128xi32>
    %c30_i32 = arith.constant 30 : i32
    %23 = vector.broadcast %c30_i32 : i32 to vector<128x128xi32>
    %24 = arith.cmpi slt, %22, %23 : vector<128x128xi32>
    %cst_17 = arith.constant 1.000000e+00 : f32
    %25 = vector.broadcast %0 : f32 to vector<128x128xf32>
    %26 = vector.broadcast %cst_17 : f32 to vector<128x128xf32>
    %27 = arith.select %24, %25, %26 : vector<128x128xi1>, vector<128x128xf32>
    %cst_18 = arith.constant 0.000000e+00 : f32
    %28 = vector.broadcast %1 : f32 to vector<128x128xf32>
    %29 = vector.broadcast %cst_18 : f32 to vector<128x128xf32>
    %30 = arith.select %24, %28, %29 : vector<128x128xi1>, vector<128x128xf32>
    %31 = arith.mulf %21, %27 : vector<128x128xf32>
    %c0_19 = arith.constant 0 : index
    %c0_20 = arith.constant 0 : index
    %32 = vector.load %arg3[%c0_19, %c0_20] : memref<128x128xf32, #tpu.memory_space<vmem>>, vector<128x128xf32>
    %33 = arith.mulf %32, %30 : vector<128x128xf32>
    %34 = arith.addf %31, %33 : vector<128x128xf32>
    %c0_21 = arith.constant 0 : index
    %c0_22 = arith.constant 0 : index
    %35 = vector.load %arg10[%c0_21, %c0_22] : memref<128x128xf32, #tpu.memory_space<vmem>>, vector<128x128xf32>
    tpu.vector_store %arg10[%c0_21, %c0_22], %34 {strides = array<i32>} : memref<128x128xf32, #tpu.memory_space<vmem>>, vector<128x128xf32>,
    return
  }
  func.func @transform_0(%arg0: i32) -> i32 {
    %c0_i32 = arith.constant 0 : i32
    %c0_i32_0 = arith.constant 0 : i32
    return %c0_i32 : i32
  }
  func.func @transform_1(%arg0: i32) -> (i32, i32) {
    %c0_i32 = arith.constant 0 : i32
    %c0_i32_0 = arith.constant 0 : i32
    return %arg0, %c0_i32 : i32, i32
  }
  func.func @transform_2(%arg0: i32) -> (i32, i32) {
    %c0_i32 = arith.constant 0 : i32
    %c0_i32_0 = arith.constant 0 : i32
    return %arg0, %c0_i32 : i32, i32
  }
  func.func @transform_3(%arg0: i32) -> (i32, i32) {
    %c0_i32 = arith.constant 0 : i32
    %c0_i32_0 = arith.constant 0 : i32
    %c0_i32_1 = arith.constant 0 : i32
    return %c0_i32, %c0_i32_0 : i32, i32
  }
  func.func @transform_4(%arg0: i32) -> (i32, i32) {
    %c0_i32 = arith.constant 0 : i32
    %c0_i32_0 = arith.constant 0 : i32
    %c0_i32_1 = arith.constant 0 : i32
    return %c0_i32, %c0_i32_0 : i32, i32
  }
  func.func @transform_5(%arg0: i32) -> (i32, i32) {
    %c0_i32 = arith.constant 0 : i32
    %c0_i32_0 = arith.constant 0 : i32
    %c0_i32_1 = arith.constant 0 : i32
    return %c0_i32, %c0_i32_0 : i32, i32
  }
  func.func @transform_6(%arg0: i32) -> (i32, i32) {
    %c0_i32 = arith.constant 0 : i32
    %c0_i32_0 = arith.constant 0 : i32
    %c0_i32_1 = arith.constant 0 : i32
    return %c0_i32, %c0_i32_0 : i32, i32
  }
  func.func @transform_7(%arg0: i32) -> (i32, i32) {
    %c0_i32 = arith.constant 0 : i32
    %c0_i32_0 = arith.constant 0 : i32
    %c0_i32_1 = arith.constant 0 : i32
    return %c0_i32, %c0_i32_0 : i32, i32
  }
  func.func @transform_8(%arg0: i32) -> (i32, i32) {
    %c0_i32 = arith.constant 0 : i32
    %c0_i32_0 = arith.constant 0 : i32
    %c0_i32_1 = arith.constant 0 : i32
    return %c0_i32, %c0_i32_0 : i32, i32
  }
  func.func @transform_9(%arg0: i32) -> (i32, i32) {
    %c0_i32 = arith.constant 0 : i32
    %c0_i32_0 = arith.constant 0 : i32
    return %arg0, %c0_i32 : i32, i32
  }
}

</mosaic_0001>

<llo_original>
// kernel: superformula_diffusion_forward.1
$region0: #{superformula_diffusion_forward.1}
  #allocation0 [shape = 'u32[]', space=smem, size = 0x4, offset = 0x4, fixed_abs, tag = 'smem constant byte address 0x4 - core index']
  #allocation1 [shape = 'u32[144,128]{1,0:T(1,128)}', space=vmem, size = 0x12000, scoped, tag = 'internal scratch']
  %s0 = inlined_call_operand.vmem [shape: f32[2], index: 0, kind: input, shape index: {}]
  %s1 = inlined_call_operand.vmem [shape: bf16[128,200], index: 1, kind: input, shape index: {}]
  %s2 = inlined_call_operand.vmem [shape: f32[128,128], index: 2, kind: input, shape index: {}]
  %s3 = inlined_call_operand.vmem [shape: bf16[200,128], index: 3, kind: input, shape index: {}]
  %s4 = inlined_call_operand.vmem [shape: f32[1,128], index: 4, kind: input, shape index: {}]
  %s5 = inlined_call_operand.vmem [shape: bf16[128,32], index: 5, kind: input, shape index: {}]
  %s6 = inlined_call_operand.vmem [shape: f32[1,32], index: 6, kind: input, shape index: {}]
  %s7 = inlined_call_operand.vmem [shape: bf16[32,138], index: 7, kind: input, shape index: {}]
  %s8 = inlined_call_operand.vmem [shape: f32[1,138], index: 8, kind: input, shape index: {}]
  %s9 = inlined_call_operand.vmem [shape: f32[128,128], index: 9, kind: output, shape index: {}]
  %s10 = sld [smem:[#allocation0]]
  $region91: #{superformula_diffusion_forward.1} parent=0
    _
  %s12 = ssub.s32 1, %s10
  %s13 = scalar_select 0, %s12, %s10
  $region1: #{superformula_diffusion_forward.1} parent=0
    #allocation2 [shape = 'u8[512]{0}', space=smem, size = 0x200, scoped, tag = 'input window, operand 0, single buffered']
    #allocation3 [shape = 's32[1]{0}', space=sflag, size = 0x4, scoped, tag = 'scoped memory for superformula_diffusion_forward.1']
    #allocation4 [shape = 'u8[8192]{0}', space=vmem, size = 0x2000, scoped, tag = 'input window, operand 7, single buffered']
    %14 = vsyncpa [#allocation3], 0
    // Predicated region
    $region2: #{superformula_diffusion_forward.1} parent=1 // pred_check
      _
    $region3: #{superformula_diffusion_forward.1} parent=1 // pred_check_branch
      %16 = sbr.rel (0) target = $region5
    $region4: #{superformula_diffusion_forward.1} parent=1 // pred_region
      %s18 = ssub.s32 16, 16
      %19 = vsyncadd [#allocation3], %s18
      %s21 = sshll.u32 %s0, 4
      %s22 = int_to_ptr.vmem [resolvable:$true] %s21
      %24 = dma.vmem_to_smem %s22, 16, [#allocation2], [#allocation3]
    $region5: #{superformula_diffusion_forward.1} parent=1 // pred_fallthru
      _
    // Predicated region
    $region6: #{superformula_diffusion_forward.1} parent=1 // pred_check
      _
    $region7: #{superformula_diffusion_forward.1} parent=1 // pred_check_branch
      %26 = sbr.rel (0) target = $region9
    $region8: #{superformula_diffusion_forward.1} parent=1 // pred_region
      _
    $region9: #{superformula_diffusion_forward.1} parent=1 // pred_fallthru
      _
    // Predicated region
    $region10: #{superformula_diffusion_forward.1} parent=1 // pred_check
      _
    $region11: #{superformula_diffusion_forward.1} parent=1 // pred_check_branch
      %28 = sbr.rel (0) target = $region13
    $region12: #{superformula_diffusion_forward.1} parent=1 // pred_region
      _
    $region13: #{superformula_diffusion_forward.1} parent=1 // pred_fallthru
      _
    // Predicated region
    $region14: #{superformula_diffusion_forward.1} parent=1 // pred_check
      _
    $region15: #{superformula_diffusion_forward.1} parent=1 // pred_check_branch
      %30 = sbr.rel (0) target = $region17
    $region16: #{superformula_diffusion_forward.1} parent=1 // pred_region
      _
    $region17: #{superformula_diffusion_forward.1} parent=1 // pred_fallthru
      _
    // Predicated region
    $region18: #{superformula_diffusion_forward.1} parent=1 // pred_check
      _
    $region19: #{superformula_diffusion_forward.1} parent=1 // pred_check_branch
      %32 = sbr.rel (0) target = $region21
    $region20: #{superformula_diffusion_forward.1} parent=1 // pred_region
      _
    $region21: #{superformula_diffusion_forward.1} parent=1 // pred_fallthru
      _
    // Predicated region
    $region22: #{superformula_diffusion_forward.1} parent=1 // pred_check
      _
    $region23: #{superformula_diffusion_forward.1} parent=1 // pred_check_branch
      %34 = sbr.rel (0) target = $region25
    $region24: #{superformula_diffusion_forward.1} parent=1 // pred_region
      _
    $region25: #{superformula_diffusion_forward.1} parent=1 // pred_fallthru
      _
    // Predicated region
    $region26: #{superformula_diffusion_forward.1} parent=1 // pred_check
      _
    $region27: #{superformula_diffusion_forward.1} parent=1 // pred_check_branch
      %36 = sbr.rel (0) target = $region29
    $region28: #{superformula_diffusion_forward.1} parent=1 // pred_region
      _
    $region29: #{superformula_diffusion_forward.1} parent=1 // pred_fallthru
      _
    // Predicated region
    $region30: #{superformula_diffusion_forward.1} parent=1 // pred_check
      _
    $region31: #{superformula_diffusion_forward.1} parent=1 // pred_check_branch
      %38 = sbr.rel (0) target = $region33
    $region32: #{superformula_diffusion_forward.1} parent=1 // pred_region
      // Predicated region
      $region34: #{superformula_diffusion_forward.1} parent=32 // pred_check
        _
      $region35: #{superformula_diffusion_forward.1} parent=32 // pred_check_branch
        %40 = sbr.rel (0) target = $region37
      $region36: #{superformula_diffusion_forward.1} parent=32 // pred_region
        // Predicated region
        $region38: #{superformula_diffusion_forward.1} parent=36 // pred_check
          _
        $region39: #{superformula_diffusion_forward.1} parent=36 // pred_check_branch
          %42 = sbr.rel target = $region41
        $region40: #{superformula_diffusion_forward.1} parent=36 // pred_region
          // Predicated region
          $region53: #{superformula_diffusion_forward.1} parent=40 // pred_check
            _
          $region54: #{superformula_diffusion_forward.1} parent=40 // pred_check_branch
            %63 = sbr.rel (0) target = $region56
          $region55: #{superformula_diffusion_forward.1} parent=40 // pred_region
            loop: start=0, step=1, limit=1
            $region57: #{superformula_diffusion_forward.1} parent=55 // loop_pre_header
              _
            $region58: #{superformula_diffusion_forward.1} parent=55 // loop_header
              %s65 = sphi 0, %s69
              %p66 = scmp.ge.s32.totalorder %s65, 1
              %s70 = sphi %s7, %s7
              %s71 = sphi [#allocation4], [#allocation4]
            $region59: #{superformula_diffusion_forward.1} parent=55 // loop_header_branch
              %68 = sbr.rel (%p66) target = $region63
            $region60: #{superformula_diffusion_forward.1} parent=55 // loop_body
              _
            $region61: #{superformula_diffusion_forward.1} parent=55 // loop_footer
              %s69 = sadd.s32 1, %s65
            $region62: #{superformula_diffusion_forward.1} parent=55 // loop_footer_branch
              %64 = sbr.rel target = $region58
            $region63: #{superformula_diffusion_forward.1} parent=55 // loop_exit
              _
            loop: start=0, step=1, limit=1
            $region64: #{superformula_diffusion_forward.1} parent=55 // loop_pre_header
              _
            $region65: #{superformula_diffusion_forward.1} parent=55 // loop_header
              %s74 = sphi 0, %s78
              %p75 = scmp.ge.s32.totalorder %s74, 1
              %s79 = sphi %s7, %s7
              %s80 = sphi [#allocation4], [#allocation4]
            $region66: #{superformula_diffusion_forward.1} parent=55 // loop_header_branch
              %77 = sbr.rel (%p75) target = $region70
            $region67: #{superformula_diffusion_forward.1} parent=55 // loop_body
              %v81 = vld [vmem:[%s79] sm:$0xf]
              %82 = vst [vmem:[%s80] sm:$0xf] %v81
              %v83 = vld [vmem:[%s79 + $0x8] sm:$0xf]
              %84 = vst [vmem:[%s80 + $0x4] sm:$0xf] %v83
              %v85 = vld [vmem:[%s79 + $0x10] sm:$0xf]
              %86 = vst [vmem:[%s80 + $0x8] sm:$0xf] %v85
              %v87 = vld [vmem:[%s79 + $0x18] sm:$0xf]
              %88 = vst [vmem:[%s80 + $0xc] sm:$0xf] %v87
            $region68: #{superformula_diffusion_forward.1} parent=55 // loop_footer
              %s78 = sadd.s32 1, %s74
            $region69: #{superformula_diffusion_forward.1} parent=55 // loop_footer_branch
              %73 = sbr.rel target = $region65
            $region70: #{superformula_diffusion_forward.1} parent=55 // loop_exit
              _
          $region56: #{superformula_diffusion_forward.1} parent=40 // pred_fallthru
            _
        $region41: #{superformula_diffusion_forward.1} parent=36 // pred_fallthru
          _
        // Predicated region
        $region42: #{superformula_diffusion_forward.1} parent=36 // pred_check
          _
        $region43: #{superformula_diffusion_forward.1} parent=36 // pred_check_branch
          %44 = sbr.rel (0) target = $region45
        $region44: #{superformula_diffusion_forward.1} parent=36 // pred_region
          loop: start=0, step=1, limit=1
          $region46: #{superformula_diffusion_forward.1} parent=44 // loop_pre_header
            _
          $region47: #{superformula_diffusion_forward.1} parent=44 // loop_header
            %s47 = sphi 0, %s51
            %p48 = scmp.ge.s32.totalorder %s47, 1
            %s52 = sphi %s7, %s7
            %s53 = sphi [#allocation4], [#allocation4]
          $region48: #{superformula_diffusion_forward.1} parent=44 // loop_header_branch
            %50 = sbr.rel (%p48) target = $region52
          $region49: #{superformula_diffusion_forward.1} parent=44 // loop_body
            %v54 = vld [vmem:[%s52] sm:$0xf]
            %55 = vst [vmem:[%s53] sm:$0xf] %v54
            %v56 = vld [vmem:[%s52 + $0x8] sm:$0xf]
            %57 = vst [vmem:[%s53 + $0x4] sm:$0xf] %v56
            %v58 = vld [vmem:[%s52 + $0x10] sm:$0xf]
            %59 = vst [vmem:[%s53 + $0x8] sm:$0xf] %v58
            %v60 = vld [vmem:[%s52 + $0x18] sm:$0xf]
            %61 = vst [vmem:[%s53 + $0xc] sm:$0xf] %v60
          $region50: #{superformula_diffusion_forward.1} parent=44 // loop_footer
            %s51 = sadd.s32 1, %s47
          $region51: #{superformula_diffusion_forward.1} parent=44 // loop_footer_branch
            %46 = sbr.rel target = $region47
          $region52: #{superformula_diffusion_forward.1} parent=44 // loop_exit
            _
        $region45: #{superformula_diffusion_forward.1} parent=36 // pred_fallthru
          _
      $region37: #{superformula_diffusion_forward.1} parent=32 // pred_fallthru
        _
      %89 = vnop
    $region33: #{superformula_diffusion_forward.1} parent=1 // pred_fallthru
      _
    // Predicated region
    $region71: #{superformula_diffusion_forward.1} parent=1 // pred_check
      _
    $region72: #{superformula_diffusion_forward.1} parent=1 // pred_check_branch
      %91 = sbr.rel (0) target = $region74
    $region73: #{superformula_diffusion_forward.1} parent=1 // pred_region
      _
    $region74: #{superformula_diffusion_forward.1} parent=1 // pred_fallthru
      _
    // Predicated region
    $region75: #{superformula_diffusion_forward.1} parent=1 // pred_check
      _
    $region76: #{superformula_diffusion_forward.1} parent=1 // pred_check_branch
      %93 = sbr.rel (0) target = $region78
    $region77: #{superformula_diffusion_forward.1} parent=1 // pred_region
      %94 = dma.done [#allocation3], 16
    $region78: #{superformula_diffusion_forward.1} parent=1 // pred_fallthru
      _
    // Predicated region
    $region79: #{superformula_diffusion_forward.1} parent=1 // pred_check
      _
    $region80: #{superformula_diffusion_forward.1} parent=1 // pred_check_branch
      %96 = sbr.rel (0) target = $region82
    $region81: #{superformula_diffusion_forward.1} parent=1 // pred_region
      _
    $region82: #{superformula_diffusion_forward.1} parent=1 // pred_fallthru
      _
    %97 = sfence
    %s99 = sld [smem:[#allocation2]]
    %s100 = sld [smem:[#allocation2 + $0x1]]
    %v101 = vld [vmem:[%s1] sm:$0xff]
    %v102 = vld [vmem:[%s1 + $0x8] sm:$0xff]
    %v103 = vld [vmem:[%s1 + $0x10] sm:$0xff]
    %v104 = vld [vmem:[%s1 + $0x18] sm:$0xff]
    %v105 = vld [vmem:[%s1 + $0x20] sm:$0xff]
    %v106 = vld [vmem:[%s1 + $0x28] sm:$0xff]
    %v107 = vld [vmem:[%s1 + $0x30] sm:$0xff]
    %v108 = vld [vmem:[%s1 + $0x38] sm:$0xff]
    %v109 = vld [vmem:[%s1 + $0x40] sm:$0xff]
    %v110 = vld [vmem:[%s1 + $0x48] sm:$0xff]
    %v111 = vld [vmem:[%s1 + $0x50] sm:$0xff]
    %v112 = vld [vmem:[%s1 + $0x58] sm:$0xff]
    %v113 = vld [vmem:[%s1 + $0x60] sm:$0xff]
    %v114 = vld [vmem:[%s1 + $0x68] sm:$0xff]
    %v115 = vld [vmem:[%s1 + $0x70] sm:$0xff]
    %v116 = vld [vmem:[%s1 + $0x78] sm:$0xff]
    %v117 = vld [vmem:[%s3] sm:$0xf]
    %v118 = vld [vmem:[%s3 + $0x4] sm:$0xf]
    %v119 = vld [vmem:[%s3 + $0x8] sm:$0xf]
    %v120 = vld [vmem:[%s3 + $0xc] sm:$0xf]
    %v121 = vld [vmem:[%s3 + $0x10] sm:$0xf]
    %v122 = vld [vmem:[%s3 + $0x14] sm:$0xf]
    %v123 = vld [vmem:[%s3 + $0x18] sm:$0xf]
    %v124 = vld [vmem:[%s3 + $0x1c] sm:$0xf]
    %v125 = vld [vmem:[%s3 + $0x20] sm:$0xf]
    %v126 = vld [vmem:[%s3 + $0x24] sm:$0xf]
    %v127 = vld [vmem:[%s3 + $0x28] sm:$0xf]
    %v128 = vld [vmem:[%s3 + $0x2c] sm:$0xf]
    %v129 = vld [vmem:[%s3 + $0x30] sm:$0xf]
    %v130 = vld [vmem:[%s3 + $0x34] sm:$0xf]
    %v131 = vld [vmem:[%s3 + $0x38] sm:$0xf]
    %v132 = vld [vmem:[%s3 + $0x3c] sm:$0xf]
    %v133 = vld [vmem:[%s3 + $0x40] sm:$0xf]
    %v134 = vld [vmem:[%s3 + $0x44] sm:$0xf]
    %v135 = vld [vmem:[%s3 + $0x48] sm:$0xf]
    %v136 = vld [vmem:[%s3 + $0x4c] sm:$0xf]
    %v137 = vld [vmem:[%s3 + $0x50] sm:$0xf]
    %v138 = vld [vmem:[%s3 + $0x54] sm:$0xf]
    %v139 = vld [vmem:[%s3 + $0x58] sm:$0xf]
    %v140 = vld [vmem:[%s3 + $0x5c] sm:$0xf]
    %v141 = vld [vmem:[%s3 + $0x60] sm:$0xf]
    %v142 = vld [vmem:[%s4] sm:$0x1]
    %v144 = vlaneseq
    %v145 = vshrl.u32 %v144, 7
    %v146 = vsub.s32 0, %v145
    %v147 = vrot.slane %v142, %v146
    %v165 = vunpack.c.l.b16 %v101
    %v166 = vunpack.c.h.b16 %v101
    %v167 = vunpack.c.l.b16 %v102
    %v168 = vunpack.c.h.b16 %v102
    %v169 = vunpack.c.l.b16 %v103
    %v170 = vunpack.c.h.b16 %v103
    %v171 = vunpack.c.l.b16 %v104
    %v172 = vunpack.c.h.b16 %v104
    %v173 = vunpack.c.l.b16 %v105
    %v174 = vunpack.c.h.b16 %v105
    %v175 = vunpack.c.l.b16 %v106
    %v176 = vunpack.c.h.b16 %v106
    %v177 = vunpack.c.l.b16 %v107
    %v178 = vunpack.c.h.b16 %v107
    %v179 = vunpack.c.l.b16 %v108
    %v180 = vunpack.c.h.b16 %v108
    %v181 = vunpack.c.l.b16 %v109
    %v182 = vunpack.c.h.b16 %v109
    %v183 = vunpack.c.l.b16 %v110
    %v184 = vunpack.c.h.b16 %v110
    %v185 = vunpack.c.l.b16 %v111
    %v186 = vunpack.c.h.b16 %v111
    %v187 = vunpack.c.l.b16 %v112
    %v188 = vunpack.c.h.b16 %v112
    %v189 = vunpack.c.l.b16 %v113
    %v190 = vunpack.c.h.b16 %v113
    %v191 = vunpack.c.l.b16 %v114
    %v192 = vunpack.c.h.b16 %v114
    %v193 = vunpack.c.l.b16 %v115
    %v194 = vunpack.c.h.b16 %v115
    %v195 = vunpack.c.l.b16 %v116
    %v196 = vunpack.c.h.b16 %v116
    %v197 = vpack.c.b16 %v167, %v165
    %v198 = vpack.c.b16 %v168, %v166
    %v199 = vpack.c.b16 %v171, %v169
    %v200 = vpack.c.b16 %v172, %v170
    %v201 = vpack.c.b16 %v175, %v173
    %v202 = vpack.c.b16 %v176, %v174
    %v203 = vpack.c.b16 %v179, %v177
    %v204 = vpack.c.b16 %v180, %v178
    %v205 = vpack.c.b16 %v183, %v181
    %v206 = vpack.c.b16 %v184, %v182
    %v207 = vpack.c.b16 %v187, %v185
    %v208 = vpack.c.b16 %v188, %v186
    %v209 = vpack.c.b16 %v191, %v189
    %v210 = vpack.c.b16 %v192, %v190
    %v211 = vpack.c.b16 %v195, %v193
    %v212 = vpack.c.b16 %v196, %v194
    %v246 = vunpack.c.l.b16 %v117
    %v247 = vunpack.c.l.b16 %v118
    %v248 = vunpack.c.l.b16 %v119
    %v249 = vunpack.c.l.b16 %v120
    %v250 = vunpack.c.l.b16 %v121
    %v251 = vunpack.c.l.b16 %v122
    %v252 = vunpack.c.l.b16 %v123
    %v253 = vunpack.c.l.b16 %v124
    %v254 = vunpack.c.l.b16 %v125
    %v255 = vunpack.c.l.b16 %v126
    %v256 = vunpack.c.l.b16 %v127
    %v257 = vunpack.c.l.b16 %v128
    %v258 = vunpack.c.l.b16 %v129
    %v259 = vunpack.c.l.b16 %v130
    %v260 = vunpack.c.l.b16 %v131
    %v261 = vunpack.c.l.b16 %v132
    %v262 = vunpack.c.l.b16 %v133
    %v263 = vunpack.c.l.b16 %v134
    %v264 = vunpack.c.l.b16 %v135
    %v265 = vunpack.c.l.b16 %v136
    %v266 = vunpack.c.l.b16 %v137
    %v267 = vunpack.c.l.b16 %v138
    %v268 = vunpack.c.l.b16 %v139
    %v269 = vunpack.c.l.b16 %v140
    %v270 = vunpack.c.l.b16 %v141
    %v271 = vpack.c.b16 %v247, %v246
    %v272 = vpack.c.b16 %v249, %v248
    %v273 = vpack.c.b16 %v251, %v250
    %v274 = vpack.c.b16 %v253, %v252
    %v275 = vpack.c.b16 %v255, %v254
    %v276 = vpack.c.b16 %v257, %v256
    %v277 = vpack.c.b16 %v259, %v258
    %v278 = vpack.c.b16 %v261, %v260
    %v279 = vpack.c.b16 %v263, %v262
    %v280 = vpack.c.b16 %v265, %v264
    %v281 = vpack.c.b16 %v267, %v266
    %v282 = vpack.c.b16 %v269, %v268
    %v283 = vpack.c.b16 %v270, %v270
    %vm296 = vcmask 588800
    %v298 = vsel %vm296, %v198, 0
    %v301 = vsel %vm296, %v200, 0
    %v304 = vsel %vm296, %v202, 0
    %v307 = vsel %vm296, %v204, 0
    %v310 = vsel %vm296, %v206, 0
    %v313 = vsel %vm296, %v208, 0
    %v316 = vsel %vm296, %v210, 0
    %v319 = vsel %vm296, %v212, 0
    %vm321 = vcmask 1043456
    %v323 = vsel %vm321, %v283, 0
    %325 = vmatprep.subr.bf16.mxu0 0
    %326 = vmatpush1.bf16.msra.mxu0 %v271
    %327 = vmatprep.subr.bf16.mxu0 0
    %328 = vmatpush1.bf16.msra.mxu0 %v272
    %329 = vmatprep.subr.bf16.mxu0 0
    %330 = vmatpush1.bf16.msra.mxu0 %v273
    %331 = vmatprep.subr.bf16.mxu0 0
    %332 = vmatpush1.bf16.msra.mxu0 %v274
    %333 = vmatprep.subr.bf16.mxu0 0
    %334 = vmatpush1.bf16.msra.mxu0 %v275
    %335 = vmatprep.subr.bf16.mxu0 0
    %336 = vmatpush1.bf16.msra.mxu0 %v276
    %337 = vmatprep.subr.bf16.mxu0 0
    %338 = vmatpush1.bf16.msra.mxu0 %v277
    %339 = vmatprep.subr.bf16.mxu0 0
    %340 = vmatpush1.bf16.msra.mxu0 %v278
    %341 = vmatprep.subr.bf16.mxu0 0
    %342 = vmatpush1.bf16.msra.mxu0 %v279
    %343 = vmatprep.subr.bf16.mxu0 0
    %344 = vmatpush1.bf16.msra.mxu0 %v280
    %345 = vmatprep.subr.bf16.mxu0 0
    %346 = vmatpush1.bf16.msra.mxu0 %v281
    %347 = vmatprep.subr.bf16.mxu0 0
    %348 = vmatpush1.bf16.msra.mxu0 %v282
    %349 = vmatprep.subr.bf16.mxu0 0
    %350 = vmatpush1.bf16.msra.mxu0 %v323
    %351 = vmatprep.subr.bf16.mxu0 0
    %352 = vmatpush1.bf16.msra.mxu0 0
    %353 = vmatprep.subr.bf16.mxu0 0
    %354 = vmatpush1.bf16.msra.mxu0 0
    %355 = vmatprep.subr.bf16.mxu0 0
    %356 = vmatpush1.bf16.msra.mxu0 0
    %357 = vmatprep.mubr.bf16.mxu0 %v298
    %358 = vmatmul.mubr.bf16.gmra.mrb[0].mxu0 %v197
    %v359 = vpop.f32.mrb[0].mxu0
    %v360 = vadd.f32 %v147, %v359
    %v361 = vpop.f32.mrb[0].mxu0
    %v362 = vpop.f32.mrb[0].mxu0
    %v363 = vadd.f32 %v147, %v362
    %v364 = vpop.f32.mrb[0].mxu0
    %365 = vmatprep.mubr.bf16.mxu0 %v301
    %366 = vmatmul.mubr.bf16.gmra.mrb[0].mxu0 %v199
    %v367 = vpop.f32.mrb[0].mxu0
    %v368 = vadd.f32 %v147, %v367
    %v369 = vpop.f32.mrb[0].mxu0
    %v370 = vpop.f32.mrb[0].mxu0
    %v371 = vadd.f32 %v147, %v370
    %v372 = vpop.f32.mrb[0].mxu0
    %373 = vmatprep.mubr.bf16.mxu0 %v304
    %374 = vmatmul.mubr.bf16.gmra.mrb[0].mxu0 %v201
    %v375 = vpop.f32.mrb[0].mxu0
    %v376 = vadd.f32 %v147, %v375
    %v377 = vpop.f32.mrb[0].mxu0
    %v378 = vpop.f32.mrb[0].mxu0
    %v379 = vadd.f32 %v147, %v378
    %v380 = vpop.f32.mrb[0].mxu0
    %381 = vmatprep.mubr.bf16.mxu0 %v307
    %382 = vmatmul.mubr.bf16.gmra.mrb[0].mxu0 %v203
    %v383 = vpop.f32.mrb[0].mxu0
    %v384 = vadd.f32 %v147, %v383
    %v385 = vpop.f32.mrb[0].mxu0
    %v386 = vpop.f32.mrb[0].mxu0
    %v387 = vadd.f32 %v147, %v386
    %v388 = vpop.f32.mrb[0].mxu0
    %389 = vmatprep.mubr.bf16.mxu0 %v310
    %390 = vmatmul.mubr.bf16.gmra.mrb[0].mxu0 %v205
    %v391 = vpop.f32.mrb[0].mxu0
    %v392 = vadd.f32 %v147, %v391
    %v393 = vpop.f32.mrb[0].mxu0
    %v394 = vpop.f32.mrb[0].mxu0
    %v395 = vadd.f32 %v147, %v394
    %v396 = vpop.f32.mrb[0].mxu0
    %397 = vmatprep.mubr.bf16.mxu0 %v313
    %398 = vmatmul.mubr.bf16.gmra.mrb[0].mxu0 %v207
    %v399 = vpop.f32.mrb[0].mxu0
    %v400 = vadd.f32 %v147, %v399
    %v401 = vpop.f32.mrb[0].mxu0
    %v402 = vpop.f32.mrb[0].mxu0
    %v403 = vadd.f32 %v147, %v402
    %v404 = vpop.f32.mrb[0].mxu0
    %405 = vmatprep.mubr.bf16.mxu0 %v316
    %406 = vmatmul.mubr.bf16.gmra.mrb[0].mxu0 %v209
    %v407 = vpop.f32.mrb[0].mxu0
    %v408 = vadd.f32 %v147, %v407
    %v409 = vpop.f32.mrb[0].mxu0
    %v410 = vpop.f32.mrb[0].mxu0
    %v411 = vadd.f32 %v147, %v410
    %v412 = vpop.f32.mrb[0].mxu0
    %413 = vmatprep.mubr.bf16.mxu0 %v319
    %414 = vmatmul.mubr.bf16.gmra.mrb[0].mxu0 %v211
    %v415 = vpop.f32.mrb[0].mxu0
    %v416 = vadd.f32 %v147, %v415
    %v417 = vpop.f32.mrb[0].mxu0
    %v418 = vpop.f32.mrb[0].mxu0
    %v419 = vadd.f32 %v147, %v418
    %v420 = vpop.f32.mrb[0].mxu0
    %421 = vdwg.mxu0
    %v422 = vmax.f32 %v360, 0.0
    %v423 = vmax.f32 %v363, 0.0
    %v424 = vmax.f32 %v368, 0.0
    %v425 = vmax.f32 %v371, 0.0
    %v426 = vmax.f32 %v376, 0.0
    %v427 = vmax.f32 %v379, 0.0
    %v428 = vmax.f32 %v384, 0.0
    %v429 = vmax.f32 %v387, 0.0
    %v430 = vmax.f32 %v392, 0.0
    %v431 = vmax.f32 %v395, 0.0
    %v432 = vmax.f32 %v400, 0.0
    %v433 = vmax.f32 %v403, 0.0
    %v434 = vmax.f32 %v408, 0.0
    %v435 = vmax.f32 %v411, 0.0
    %v436 = vmax.f32 %v416, 0.0
    %v437 = vmax.f32 %v419, 0.0
    %v438 = vpack.c.bf16 %v423, %v422
    %v439 = vpack.c.bf16 %v425, %v424
    %v440 = vpack.c.bf16 %v427, %v426
    %v441 = vpack.c.bf16 %v429, %v428
    %v442 = vpack.c.bf16 %v431, %v430
    %v443 = vpack.c.bf16 %v433, %v432
    %v444 = vpack.c.bf16 %v435, %v434
    %v445 = vpack.c.bf16 %v437, %v436
    %v446 = vld [vmem:[%s5] sm:$0xf]
    %v447 = vld [vmem:[%s5 + $0x4] sm:$0xf]
    %v448 = vld [vmem:[%s5 + $0x8] sm:$0xf]
    %v449 = vld [vmem:[%s5 + $0xc] sm:$0xf]
    %v450 = vld [vmem:[%s5 + $0x10] sm:$0xf]
    %v451 = vld [vmem:[%s5 + $0x14] sm:$0xf]
    %v452 = vld [vmem:[%s5 + $0x18] sm:$0xf]
    %v453 = vld [vmem:[%s5 + $0x1c] sm:$0xf]
    %v454 = vld [vmem:[%s5 + $0x20] sm:$0xf]
    %v455 = vld [vmem:[%s5 + $0x24] sm:$0xf]
    %v456 = vld [vmem:[%s5 + $0x28] sm:$0xf]
    %v457 = vld [vmem:[%s5 + $0x2c] sm:$0xf]
    %v458 = vld [vmem:[%s5 + $0x30] sm:$0xf]
    %v459 = vld [vmem:[%s5 + $0x34] sm:$0xf]
    %v460 = vld [vmem:[%s5 + $0x38] sm:$0xf]
    %v461 = vld [vmem:[%s5 + $0x3c] sm:$0xf]
    %v462 = vld [vmem:[%s6] sm:$0x1]
    %v464 = vlaneseq
    %v465 = vshrl.u32 %v464, 7
    %v466 = vsub.s32 0, %v465
    %v467 = vrot.slane %v462, %v466
    %v485 = vunpack.c.l.b16 %v446
    %v486 = vunpack.c.l.b16 %v447
    %v487 = vunpack.c.l.b16 %v448
    %v488 = vunpack.c.l.b16 %v449
    %v489 = vunpack.c.l.b16 %v450
    %v490 = vunpack.c.l.b16 %v451
    %v491 = vunpack.c.l.b16 %v452
    %v492 = vunpack.c.l.b16 %v453
    %v493 = vunpack.c.l.b16 %v454
    %v494 = vunpack.c.l.b16 %v455
    %v495 = vunpack.c.l.b16 %v456
    %v496 = vunpack.c.l.b16 %v457
    %v497 = vunpack.c.l.b16 %v458
    %v498 = vunpack.c.l.b16 %v459
    %v499 = vunpack.c.l.b16 %v460
    %v500 = vunpack.c.l.b16 %v461
    %v501 = vpack.c.b16 %v486, %v485
    %v502 = vpack.c.b16 %v488, %v487
    %v503 = vpack.c.b16 %v490, %v489
    %v504 = vpack.c.b16 %v492, %v491
    %v505 = vpack.c.b16 %v494, %v493
    %v506 = vpack.c.b16 %v496, %v495
    %v507 = vpack.c.b16 %v498, %v497
    %v508 = vpack.c.b16 %v500, %v499
    %517 = vmatprep.subr.bf16.mxu0 0
    %518 = vmatpush1.bf16.msra.mxu0 %v501
    %519 = vmatprep.subr.bf16.mxu0 0
    %520 = vmatpush1.bf16.msra.mxu0 %v502
    %521 = vmatprep.subr.bf16.mxu0 0
    %522 = vmatpush1.bf16.msra.mxu0 %v503
    %523 = vmatprep.subr.bf16.mxu0 0
    %524 = vmatpush1.bf16.msra.mxu0 %v504
    %525 = vmatprep.subr.bf16.mxu0 0
    %526 = vmatpush1.bf16.msra.mxu0 %v505
    %527 = vmatprep.subr.bf16.mxu0 0
    %528 = vmatpush1.bf16.msra.mxu0 %v506
    %529 = vmatprep.subr.bf16.mxu0 0
    %530 = vmatpush1.bf16.msra.mxu0 %v507
    %531 = vmatprep.subr.bf16.mxu0 0
    %532 = vmatpush1.bf16.msra.mxu0 %v508
    %533 = vmatprep.subr.bf16.mxu0 0
    %534 = vmatpush1.bf16.msra.mxu0 0
    %535 = vmatprep.subr.bf16.mxu0 0
    %536 = vmatpush1.bf16.msra.mxu0 0
    %537 = vmatprep.subr.bf16.mxu0 0
    %538 = vmatpush1.bf16.msra.mxu0 0
    %539 = vmatprep.subr.bf16.mxu0 0
    %540 = vmatpush1.bf16.msra.mxu0 0
    %541 = vmatprep.subr.bf16.mxu0 0
    %542 = vmatpush1.bf16.msra.mxu0 0
    %543 = vmatprep.subr.bf16.mxu0 0
    %544 = vmatpush1.bf16.msra.mxu0 0
    %545 = vmatprep.subr.bf16.mxu0 0
    %546 = vmatpush1.bf16.msra.mxu0 0
    %547 = vmatprep.subr.bf16.mxu0 0
    %548 = vmatpush1.bf16.msra.mxu0 0
    %549 = vmatprep.mubr.bf16.mxu0 0
    %550 = vmatmul.mubr.bf16.gmra.mrb[0].mxu0 %v438
    %v551 = vpop.f32.mrb[0].mxu0
    %v552 = vadd.f32 %v467, %v551
    %v553 = vpop.f32.mrb[0].mxu0
    %v554 = vpop.f32.mrb[0].mxu0
    %v555 = vadd.f32 %v467, %v554
    %v556 = vpop.f32.mrb[0].mxu0
    %557 = vmatprep.mubr.bf16.mxu0 0
    %558 = vmatmul.mubr.bf16.gmra.mrb[0].mxu0 %v439
    %v559 = vpop.f32.mrb[0].mxu0
    %v560 = vadd.f32 %v467, %v559
    %v561 = vpop.f32.mrb[0].mxu0
    %v562 = vpop.f32.mrb[0].mxu0
    %v563 = vadd.f32 %v467, %v562
    %v564 = vpop.f32.mrb[0].mxu0
    %565 = vmatprep.mubr.bf16.mxu0 0
    %566 = vmatmul.mubr.bf16.gmra.mrb[0].mxu0 %v440
    %v567 = vpop.f32.mrb[0].mxu0
    %v568 = vadd.f32 %v467, %v567
    %v569 = vpop.f32.mrb[0].mxu0
    %v570 = vpop.f32.mrb[0].mxu0
    %v571 = vadd.f32 %v467, %v570
    %v572 = vpop.f32.mrb[0].mxu0
    %573 = vmatprep.mubr.bf16.mxu0 0
    %574 = vmatmul.mubr.bf16.gmra.mrb[0].mxu0 %v441
    %v575 = vpop.f32.mrb[0].mxu0
    %v576 = vadd.f32 %v467, %v575
    %v577 = vpop.f32.mrb[0].mxu0
    %v578 = vpop.f32.mrb[0].mxu0
    %v579 = vadd.f32 %v467, %v578
    %v580 = vpop.f32.mrb[0].mxu0
    %581 = vmatprep.mubr.bf16.mxu0 0
    %582 = vmatmul.mubr.bf16.gmra.mrb[0].mxu0 %v442
    %v583 = vpop.f32.mrb[0].mxu0
    %v584 = vadd.f32 %v467, %v583
    %v585 = vpop.f32.mrb[0].mxu0
    %v586 = vpop.f32.mrb[0].mxu0
    %v587 = vadd.f32 %v467, %v586
    %v588 = vpop.f32.mrb[0].mxu0
    %589 = vmatprep.mubr.bf16.mxu0 0
    %590 = vmatmul.mubr.bf16.gmra.mrb[0].mxu0 %v443
    %v591 = vpop.f32.mrb[0].mxu0
    %v592 = vadd.f32 %v467, %v591
    %v593 = vpop.f32.mrb[0].mxu0
    %v594 = vpop.f32.mrb[0].mxu0
    %v595 = vadd.f32 %v467, %v594
    %v596 = vpop.f32.mrb[0].mxu0
    %597 = vmatprep.mubr.bf16.mxu0 0
    %598 = vmatmul.mubr.bf16.gmra.mrb[0].mxu0 %v444
    %v599 = vpop.f32.mrb[0].mxu0
    %v600 = vadd.f32 %v467, %v599
    %v601 = vpop.f32.mrb[0].mxu0
    %v602 = vpop.f32.mrb[0].mxu0
    %v603 = vadd.f32 %v467, %v602
    %v604 = vpop.f32.mrb[0].mxu0
    %605 = vmatprep.mubr.bf16.mxu0 0
    %606 = vmatmul.mubr.bf16.gmra.mrb[0].mxu0 %v445
    %v607 = vpop.f32.mrb[0].mxu0
    %v608 = vadd.f32 %v467, %v607
    %v609 = vpop.f32.mrb[0].mxu0
    %v610 = vpop.f32.mrb[0].mxu0
    %v611 = vadd.f32 %v467, %v610
    %v612 = vpop.f32.mrb[0].mxu0
    %613 = vdwg.mxu0
    %v614 = vpack.c.bf16 %v555, %v552
    %v615 = vpack.c.bf16 %v563, %v560
    %v616 = vpack.c.bf16 %v571, %v568
    %v617 = vpack.c.bf16 %v579, %v576
    %v618 = vpack.c.bf16 %v587, %v584
    %v619 = vpack.c.bf16 %v595, %v592
    %v620 = vpack.c.bf16 %v603, %v600
    %v621 = vpack.c.bf16 %v611, %v608
    %v622 = vld [vmem:[#allocation4] sm:$0xf]
    %v623 = vld [vmem:[#allocation4 + $0x4] sm:$0xf]
    %v624 = vld [vmem:[#allocation4 + $0x8] sm:$0xf]
    %v625 = vld [vmem:[#allocation4 + $0xc] sm:$0xf]
    %v626 = vld [vmem:[%s8] sm:$0x1]
    %v628 = vlaneseq
    %v629 = vshrl.u32 %v628, 7
    %v630 = vsub.s32 0, %v629
    %v631 = vrot.slane %v626, %v630
    %v637 = vunpack.c.l.b16 %v622
    %v638 = vunpack.c.l.b16 %v623
    %v639 = vunpack.c.l.b16 %v624
    %v640 = vunpack.c.l.b16 %v625
    %v641 = vpack.c.b16 %v638, %v637
    %v642 = vpack.c.b16 %v640, %v639
    %vm645 = vcmask 261120
    %v647 = vsel %vm645, %v614, 0
    %v650 = vsel %vm645, %v615, 0
    %v653 = vsel %vm645, %v616, 0
    %v656 = vsel %vm645, %v617, 0
    %v659 = vsel %vm645, %v618, 0
    %v662 = vsel %vm645, %v619, 0
    %v665 = vsel %vm645, %v620, 0
    %v668 = vsel %vm645, %v621, 0
    %670 = vmatprep.subr.bf16.mxu0 0
    %671 = vmatpush1.bf16.msra.mxu0 %v641
    %672 = vmatprep.subr.bf16.mxu0 0
    %673 = vmatpush1.bf16.msra.mxu0 %v642
    %674 = vmatprep.subr.bf16.mxu0 0
    %675 = vmatpush1.bf16.msra.mxu0 0
    %676 = vmatprep.subr.bf16.mxu0 0
    %677 = vmatpush1.bf16.msra.mxu0 0
    %678 = vmatprep.subr.bf16.mxu0 0
    %679 = vmatpush1.bf16.msra.mxu0 0
    %680 = vmatprep.subr.bf16.mxu0 0
    %681 = vmatpush1.bf16.msra.mxu0 0
    %682 = vmatprep.subr.bf16.mxu0 0
    %683 = vmatpush1.bf16.msra.mxu0 0
    %684 = vmatprep.subr.bf16.mxu0 0
    %685 = vmatpush1.bf16.msra.mxu0 0
    %686 = vmatprep.subr.bf16.mxu0 0
    %687 = vmatpush1.bf16.msra.mxu0 0
    %688 = vmatprep.subr.bf16.mxu0 0
    %689 = vmatpush1.bf16.msra.mxu0 0
    %690 = vmatprep.subr.bf16.mxu0 0
    %691 = vmatpush1.bf16.msra.mxu0 0
    %692 = vmatprep.subr.bf16.mxu0 0
    %693 = vmatpush1.bf16.msra.mxu0 0
    %694 = vmatprep.subr.bf16.mxu0 0
    %695 = vmatpush1.bf16.msra.mxu0 0
    %696 = vmatprep.subr.bf16.mxu0 0
    %697 = vmatpush1.bf16.msra.mxu0 0
    %698 = vmatprep.subr.bf16.mxu0 0
    %699 = vmatpush1.bf16.msra.mxu0 0
    %700 = vmatprep.subr.bf16.mxu0 0
    %701 = vmatpush1.bf16.msra.mxu0 0
    %702 = vmatprep.mubr.bf16.mxu0 0
    %703 = vmatmul.mubr.bf16.gmra.mrb[0].mxu0 %v647
    %v704 = vpop.f32.mrb[0].mxu0
    %v705 = vadd.f32 %v631, %v704
    %v706 = vpop.f32.mrb[0].mxu0
    %v707 = vpop.f32.mrb[0].mxu0
    %v708 = vadd.f32 %v631, %v707
    %v709 = vpop.f32.mrb[0].mxu0
    %710 = vmatprep.mubr.bf16.mxu0 0
    %711 = vmatmul.mubr.bf16.gmra.mrb[0].mxu0 %v650
    %v712 = vpop.f32.mrb[0].mxu0
    %v713 = vadd.f32 %v631, %v712
    %v714 = vpop.f32.mrb[0].mxu0
    %v715 = vpop.f32.mrb[0].mxu0
    %v716 = vadd.f32 %v631, %v715
    %v717 = vpop.f32.mrb[0].mxu0
    %718 = vmatprep.mubr.bf16.mxu0 0
    %719 = vmatmul.mubr.bf16.gmra.mrb[0].mxu0 %v653
    %v720 = vpop.f32.mrb[0].mxu0
    %v721 = vadd.f32 %v631, %v720
    %v722 = vpop.f32.mrb[0].mxu0
    %v723 = vpop.f32.mrb[0].mxu0
    %v724 = vadd.f32 %v631, %v723
    %v725 = vpop.f32.mrb[0].mxu0
    %726 = vmatprep.mubr.bf16.mxu0 0
    %727 = vmatmul.mubr.bf16.gmra.mrb[0].mxu0 %v656
    %v728 = vpop.f32.mrb[0].mxu0
    %v729 = vadd.f32 %v631, %v728
    %v730 = vpop.f32.mrb[0].mxu0
    %v731 = vpop.f32.mrb[0].mxu0
    %v732 = vadd.f32 %v631, %v731
    %v733 = vpop.f32.mrb[0].mxu0
    %734 = vmatprep.mubr.bf16.mxu0 0
    %735 = vmatmul.mubr.bf16.gmra.mrb[0].mxu0 %v659
    %v736 = vpop.f32.mrb[0].mxu0
    %v737 = vadd.f32 %v631, %v736
    %v738 = vpop.f32.mrb[0].mxu0
    %v739 = vpop.f32.mrb[0].mxu0
    %v740 = vadd.f32 %v631, %v739
    %v741 = vpop.f32.mrb[0].mxu0
    %742 = vmatprep.mubr.bf16.mxu0 0
    %743 = vmatmul.mubr.bf16.gmra.mrb[0].mxu0 %v662
    %v744 = vpop.f32.mrb[0].mxu0
    %v745 = vadd.f32 %v631, %v744
    %v746 = vpop.f32.mrb[0].mxu0
    %v747 = vpop.f32.mrb[0].mxu0
    %v748 = vadd.f32 %v631, %v747
    %v749 = vpop.f32.mrb[0].mxu0
    %750 = vmatprep.mubr.bf16.mxu0 0
    %751 = vmatmul.mubr.bf16.gmra.mrb[0].mxu0 %v665
    %v752 = vpop.f32.mrb[0].mxu0
    %v753 = vadd.f32 %v631, %v752
    %v754 = vpop.f32.mrb[0].mxu0
    %v755 = vpop.f32.mrb[0].mxu0
    %v756 = vadd.f32 %v631, %v755
    %v757 = vpop.f32.mrb[0].mxu0
    %758 = vmatprep.mubr.bf16.mxu0 0
    %759 = vmatmul.mubr.bf16.gmra.mrb[0].mxu0 %v668
    %v760 = vpop.f32.mrb[0].mxu0
    %v761 = vadd.f32 %v631, %v760
    %v762 = vpop.f32.mrb[0].mxu0
    %v763 = vpop.f32.mrb[0].mxu0
    %v764 = vadd.f32 %v631, %v763
    %v765 = vpop.f32.mrb[0].mxu0
    %766 = vdwg.mxu0
    %v767 = vlaneseq
    %v768 = vand.u32 %v767, 127
    %vm769 = vcmp.lt.s32.totalorder %v768, 30
    %v770 = vstv %s99
    %v771 = vsel %vm769, %v770, 1.0
    %v772 = vstv %s100
    %v773 = vsel %vm769, %v772, 0.0
    %v774 = vmul.f32 %v705, %v771
    %v775 = vmul.f32 %v708, %v771
    %v776 = vmul.f32 %v713, %v771
    %v777 = vmul.f32 %v716, %v771
    %v778 = vmul.f32 %v721, %v771
    %v779 = vmul.f32 %v724, %v771
    %v780 = vmul.f32 %v729, %v771
    %v781 = vmul.f32 %v732, %v771
    %v782 = vmul.f32 %v737, %v771
    %v783 = vmul.f32 %v740, %v771
    %v784 = vmul.f32 %v745, %v771
    %v785 = vmul.f32 %v748, %v771
    %v786 = vmul.f32 %v753, %v771
    %v787 = vmul.f32 %v756, %v771
    %v788 = vmul.f32 %v761, %v771
    %v789 = vmul.f32 %v764, %v771
    %v790 = vld [vmem:[%s2] sm:$0xff]
    %v791 = vld [vmem:[%s2 + $0x8] sm:$0xff]
    %v792 = vld [vmem:[%s2 + $0x10] sm:$0xff]
    %v793 = vld [vmem:[%s2 + $0x18] sm:$0xff]
    %v794 = vld [vmem:[%s2 + $0x20] sm:$0xff]
    %v795 = vld [vmem:[%s2 + $0x28] sm:$0xff]
    %v796 = vld [vmem:[%s2 + $0x30] sm:$0xff]
    %v797 = vld [vmem:[%s2 + $0x38] sm:$0xff]
    %v798 = vld [vmem:[%s2 + $0x40] sm:$0xff]
    %v799 = vld [vmem:[%s2 + $0x48] sm:$0xff]
    %v800 = vld [vmem:[%s2 + $0x50] sm:$0xff]
    %v801 = vld [vmem:[%s2 + $0x58] sm:$0xff]
    %v802 = vld [vmem:[%s2 + $0x60] sm:$0xff]
    %v803 = vld [vmem:[%s2 + $0x68] sm:$0xff]
    %v804 = vld [vmem:[%s2 + $0x70] sm:$0xff]
    %v805 = vld [vmem:[%s2 + $0x78] sm:$0xff]
    %v806 = vmul.f32 %v790, %v773
    %v807 = vmul.f32 %v791, %v773
    %v808 = vmul.f32 %v792, %v773
    %v809 = vmul.f32 %v793, %v773
    %v810 = vmul.f32 %v794, %v773
    %v811 = vmul.f32 %v795, %v773
    %v812 = vmul.f32 %v796, %v773
    %v813 = vmul.f32 %v797, %v773
    %v814 = vmul.f32 %v798, %v773
    %v815 = vmul.f32 %v799, %v773
    %v816 = vmul.f32 %v800, %v773
    %v817 = vmul.f32 %v801, %v773
    %v818 = vmul.f32 %v802, %v773
    %v819 = vmul.f32 %v803, %v773
    %v820 = vmul.f32 %v804, %v773
    %v821 = vmul.f32 %v805, %v773
    %v822 = vadd.f32 %v774, %v806
    %v823 = vadd.f32 %v775, %v807
    %v824 = vadd.f32 %v776, %v808
    %v825 = vadd.f32 %v777, %v809
    %v826 = vadd.f32 %v778, %v810
    %v827 = vadd.f32 %v779, %v811
    %v828 = vadd.f32 %v780, %v812
    %v829 = vadd.f32 %v781, %v813
    %v830 = vadd.f32 %v782, %v814
    %v831 = vadd.f32 %v783, %v815
    %v832 = vadd.f32 %v784, %v816
    %v833 = vadd.f32 %v785, %v817
    %v834 = vadd.f32 %v786, %v818
    %v835 = vadd.f32 %v787, %v819
    %v836 = vadd.f32 %v788, %v820
    %v837 = vadd.f32 %v789, %v821
    %838 = vst [vmem:[%s9] sm:$0xff] %v822
    %839 = vst [vmem:[%s9 + $0x8] sm:$0xff] %v823
    %840 = vst [vmem:[%s9 + $0x10] sm:$0xff] %v824
    %841 = vst [vmem:[%s9 + $0x18] sm:$0xff] %v825
    %842 = vst [vmem:[%s9 + $0x20] sm:$0xff] %v826
    %843 = vst [vmem:[%s9 + $0x28] sm:$0xff] %v827
    %844 = vst [vmem:[%s9 + $0x30] sm:$0xff] %v828
    %845 = vst [vmem:[%s9 + $0x38] sm:$0xff] %v829
    %846 = vst [vmem:[%s9 + $0x40] sm:$0xff] %v830
    %847 = vst [vmem:[%s9 + $0x48] sm:$0xff] %v831
    %848 = vst [vmem:[%s9 + $0x50] sm:$0xff] %v832
    %849 = vst [vmem:[%s9 + $0x58] sm:$0xff] %v833
    %850 = vst [vmem:[%s9 + $0x60] sm:$0xff] %v834
    %851 = vst [vmem:[%s9 + $0x68] sm:$0xff] %v835
    %852 = vst [vmem:[%s9 + $0x70] sm:$0xff] %v836
    %853 = vst [vmem:[%s9 + $0x78] sm:$0xff] %v837
    // Predicated region
    $region83: #{superformula_diffusion_forward.1} parent=1 // pred_check
      _
    $region84: #{superformula_diffusion_forward.1} parent=1 // pred_check_branch
      %855 = sbr.rel (0) target = $region86
    $region85: #{superformula_diffusion_forward.1} parent=1 // pred_region
      _
    $region86: #{superformula_diffusion_forward.1} parent=1 // pred_fallthru
      _
    // Predicated region
    $region87: #{superformula_diffusion_forward.1} parent=1 // pred_check
      _
    $region88: #{superformula_diffusion_forward.1} parent=1 // pred_check_branch
      %857 = sbr.rel (0) target = $region90
    $region89: #{superformula_diffusion_forward.1} parent=1 // pred_region
      _
    $region90: #{superformula_diffusion_forward.1} parent=1 // pred_fallthru
      _
    %858 = vsyncpa [#allocation3], 1

</llo_original>
